<compile_context>
chip_gen: v5e
topology: v5e:2x2
jax: 0.10.0
libtpu: 0.0.40
codegen_flags: <defaults>
</compile_context>

<pallas_src>
import jax
import jax.numpy as jnp
from jax.experimental import pallas as pl
from jax.experimental.pallas import tpu as pltpu


def convkb_kernel(hrt_ref,                  # (tb, 3*D) VMEM slab: head|rel|tail
                  cw_ref, cb_ref, fb_ref,   # SMEM: (3*C,), (C,), (1,)
                  fw_ref,                   # (C, D) VMEM fc weights (resident)
                  out_ref):                 # (tb, 1) VMEM output
    D = fw_ref.shape[1]
    C = fw_ref.shape[0]

    # 128-aligned static lane slices of the single input slab (free views).
    h = hrt_ref[:, 0 * D:1 * D].astype(jnp.float32)
    r = hrt_ref[:, 1 * D:2 * D].astype(jnp.float32)
    t = hrt_ref[:, 2 * D:3 * D].astype(jnp.float32)
    fw = fw_ref[...].astype(jnp.float32)    # hoisted once per tile: (C, D)

    # Accumulate relu(conv_c) * fw[c] into a single (tb, D) accumulator so the
    # expensive cross-lane reduction happens exactly once per tile.
    acc = jnp.zeros(h.shape, jnp.float32)
    # C is small and static -> unrolled Python loop (pure VPU work per iter).
    for c in range(C):
        conv = jnp.maximum(
            cw_ref[3 * c + 0] * h
            + cw_ref[3 * c + 1] * r
            + cw_ref[3 * c + 2] * t
            + cb_ref[c],
            0.0)                                        # ReLU
        acc = acc + conv * fw[c][None, :]

    # Output tile is (tb, 1); writeback bytes are tiny, so the masked store is
    # acceptable (lane-dense output was reviewed as low priority here).
    out_ref[...] = jnp.sum(acc, axis=-1, keepdims=True) + fb_ref[0]


def _round_up(x, m):
    return ((x + m - 1) // m) * m


def _choose_tb(B, tb_max=2048):
    """Largest batch tile (multiple of 8) up to tb_max; no forced grid split
    (single-TensorCore parts gain nothing from it)."""
    return max(8, min(tb_max, _round_up(max(B, 1), 8)))


def convkb_forward(hrt, conv_w, conv_b, fc_w, fc_b, *, tb=None):
    """hrt: (B, 3*D) concatenated head|relation|tail embeddings (f32 or bf16).
    conv_w: (C, 3).  conv_b: (C,).  fc_w: (C, D) (row-major reshape of the
    ConvKB fc weight (1, C*D)).  fc_b: (1,).  Returns (B, 1) f32 scores."""
    B, threeD = hrt.shape
    C, D = fc_w.shape
    assert threeD == 3 * D
    if tb is None:
        tb = _choose_tb(B)

    # Pad the batch to a multiple of tb; padded rows are sliced off afterwards.
    B_pad = pl.cdiv(B, tb) * tb
    if B_pad != B:
        hrt = jnp.pad(hrt, ((0, B_pad - B), (0, 0)))

    grid = (B_pad // tb,)

    out = pl.pallas_call(
        convkb_kernel,
        out_shape=jax.ShapeDtypeStruct((B_pad, 1), jnp.float32),
        grid_spec=pltpu.PrefetchScalarGridSpec(
            num_scalar_prefetch=0,
            grid=grid,
            in_specs=[
                pl.BlockSpec((tb, 3 * D), lambda i: (i, 0)),     # hrt slab
                pl.BlockSpec(memory_space=pltpu.SMEM),           # conv_w (3*C,)
                pl.BlockSpec(memory_space=pltpu.SMEM),           # conv_b (C,)
                pl.BlockSpec(memory_space=pltpu.SMEM),           # fc_b  (1,)
                pl.BlockSpec((C, D), lambda i: (0, 0)),          # fc_w (resident)
            ],
            out_specs=pl.BlockSpec((tb, 1), lambda i: (i, 0)),
        ),
        compiler_params=pltpu.CompilerParams(
            dimension_semantics=("parallel",)),
    )(hrt, conv_w.reshape(-1), conv_b, fc_b, fc_w)

    return out[:B]


def sp_kbgat_conv_only_forward(params, batch_inputs, *, tb=None):
    """Glue: embedding gathers + concat in plain JAX (one fused (B, 3D) HBM
    write), hot path (conv + relu + fc) in Pallas."""
    ent = params["final_entity_embeddings"]      # (num_nodes, D), bf16 or f32
    rel = params["final_relation_embeddings"]    # (num_relation, D)
    h = ent[batch_inputs[:, 0], :]
    r = rel[batch_inputs[:, 1], :]
    t = ent[batch_inputs[:, 2], :]
    hrt = jnp.concatenate([h, r, t], axis=1)     # (B, 3*D), single input slab
    return convkb_forward(hrt,
                          params["conv_w"], params["conv_b"],
                          params["fc_w"], params["fc_b"], tb=tb)


def reference_forward(params, batch_inputs):
    """Pure-JAX reference mirroring the PyTorch ConvKB math (f32 compute on
    the same stored-dtype embedding values)."""
    ent = params["final_entity_embeddings"].astype(jnp.float32)
    rel = params["final_relation_embeddings"].astype(jnp.float32)
    h = ent[batch_inputs[:, 0], :]
    r = rel[batch_inputs[:, 1], :]
    t = ent[batch_inputs[:, 2], :]
    cw, cb = params["conv_w"], params["conv_b"]               # (C,3), (C,)
    conv = (cw[None, :, 0, None] * h[:, None, :]
            + cw[None, :, 1, None] * r[:, None, :]
            + cw[None, :, 2, None] * t[:, None, :]
            + cb[None, :, None])                              # (B, C, D)
    conv = jnp.maximum(conv, 0.0)
    flat = conv.reshape(conv.shape[0], -1)                    # (B, C*D), C-major
    return flat @ params["fc_w"].reshape(-1, 1) + params["fc_b"][0]


if __name__ == "__main__":
    key = jax.random.PRNGKey(0)

    # Small, shape-consistent config:
    num_nodes = 32
    num_relation = 8
    entity_out_dim = [64, 32]
    nheads_GAT = [2, 2]
    conv_out_channels = 4
    D = entity_out_dim[0] * nheads_GAT[0]        # 128 (lane-sized embedding dim)
    C = conv_out_channels
    B = 16                                        # batch of triples

    k = jax.random.split(key, 6)
    params = {
        # nn.Parameter(torch.randn(...)) -- stored bf16 (HBM-read-bound kernel)
        "final_entity_embeddings":
            jax.random.normal(k[0], (num_nodes, D), jnp.float32).astype(jnp.bfloat16),
        "final_relation_embeddings":
            jax.random.normal(k[1], (num_relation, D), jnp.float32).astype(jnp.bfloat16),
        # ConvKB Conv2d(1, C, (1,3)) weight (C,1,1,3) -> (C,3)
        "conv_w": jax.random.normal(k[2], (C, 3), jnp.float32) * 0.7,
        "conv_b": jax.random.normal(k[3], (C,), jnp.float32) * 0.1,
        # ConvKB Linear(C*D, 1) weight (1, C*D) -> stored as (C, D) row-major
        "fc_w": jax.random.normal(k[4], (C, D), jnp.float32) * 0.05,
        "fc_b": jnp.zeros((1,), jnp.float32),
    }

    # batch_inputs[:, 0]=head entity id, [:,1]=relation id, [:,2]=tail entity id
    kb = jax.random.split(k[5], 3)
    batch_inputs = jnp.stack([
        jax.random.randint(kb[0], (B,), 0, num_nodes),
        jax.random.randint(kb[1], (B,), 0, num_relation),
        jax.random.randint(kb[2], (B,), 0, num_nodes),
    ], axis=1).astype(jnp.int32)                 # (B, 3)

    out = sp_kbgat_conv_only_forward(params, batch_inputs)
    out = jax.block_until_ready(out)

    ref = reference_forward(params, batch_inputs)
    assert out.shape == (B, 1)
    assert jnp.allclose(out, ref, atol=1e-3, rtol=1e-3), (out, ref)

    # Also exercise the non-multiple-of-tile batch path (wrapper padding).
    B_odd = 13
    out_odd = sp_kbgat_conv_only_forward(params, batch_inputs[:B_odd])
    out_odd = jax.block_until_ready(out_odd)
    ref_odd = reference_forward(params, batch_inputs[:B_odd])
    assert out_odd.shape == (B_odd, 1)
    assert jnp.allclose(out_odd, ref_odd, atol=1e-3, rtol=1e-3), (out_odd, ref_odd)

    print("KERNEL_OK")
</pallas_src>

<mosaic_0001>
module attributes {stable_mosaic.version = 11 : i64} {
  func.func @convkb_kernel(%arg0: i32, %arg1: memref<16x384xbf16, #tpu.memory_space<vmem>>, %arg2: memref<12xf32, #tpu.memory_space<smem>>, %arg3: memref<4xf32, #tpu.memory_space<smem>>, %arg4: memref<1xf32, #tpu.memory_space<smem>>, %arg5: memref<4x128xf32, #tpu.memory_space<vmem>>, %arg6: memref<16x1xf32, #tpu.memory_space<vmem>>) attributes {dimension_semantics = [#tpu.dimension_semantics<parallel>], iteration_bounds = array<i64: 1>, scalar_prefetch = 0 : i64, scratch_operands = 0 : i64, tpu.core_type = #tpu.core_type<tc>, window_params = [{transform_indices = @transform_0, window_bounds = array<i64: 16, 384>}, {transform_indices = @transform_1, window_bounds = array<i64: 12>}, {transform_indices = @transform_2, window_bounds = array<i64: 4>}, {transform_indices = @transform_3, window_bounds = array<i64: 1>}, {pipeline_mode = #tpu.pipeline_mode<synchronous>, transform_indices = @transform_4, window_bounds = array<i64: 4, 128>}, {transform_indices = @transform_5, window_bounds = array<i64: 16, 1>}]} {
    %c0 = arith.constant 0 : index
    %c0_0 = arith.constant 0 : index
    %0 = vector.load %arg1[%c0, %c0_0] : memref<16x384xbf16, #tpu.memory_space<vmem>>, vector<16x128xbf16>
    %1 = arith.extf %0 : vector<16x128xbf16> to vector<16x128xf32>
    %c0_1 = arith.constant 0 : index
    %c128 = arith.constant 128 : index
    %2 = vector.load %arg1[%c0_1, %c128] : memref<16x384xbf16, #tpu.memory_space<vmem>>, vector<16x128xbf16>
    %3 = arith.extf %2 : vector<16x128xbf16> to vector<16x128xf32>
    %c0_2 = arith.constant 0 : index
    %c256 = arith.constant 256 : index
    %4 = vector.load %arg1[%c0_2, %c256] : memref<16x384xbf16, #tpu.memory_space<vmem>>, vector<16x128xbf16>
    %5 = arith.extf %4 : vector<16x128xbf16> to vector<16x128xf32>
    %c0_3 = arith.constant 0 : index
    %c0_4 = arith.constant 0 : index
    %6 = vector.load %arg5[%c0_3, %c0_4] : memref<4x128xf32, #tpu.memory_space<vmem>>, vector<4x128xf32>
    %cst = arith.constant 0.000000e+00 : f32
    %7 = vector.broadcast %cst : f32 to vector<16x128xf32>
    %c0_5 = arith.constant 0 : index
    %8 = memref.load %arg2[%c0_5] : memref<12xf32, #tpu.memory_space<smem>>
    %9 = vector.broadcast %8 : f32 to vector<16x128xf32>
    %10 = arith.mulf %9, %1 : vector<16x128xf32>
    %c1 = arith.constant 1 : index
    %11 = memref.load %arg2[%c1] : memref<12xf32, #tpu.memory_space<smem>>
    %12 = vector.broadcast %11 : f32 to vector<16x128xf32>
    %13 = arith.mulf %12, %3 : vector<16x128xf32>
    %14 = arith.addf %10, %13 : vector<16x128xf32>
    %c2 = arith.constant 2 : index
    %15 = memref.load %arg2[%c2] : memref<12xf32, #tpu.memory_space<smem>>
    %16 = vector.broadcast %15 : f32 to vector<16x128xf32>
    %17 = arith.mulf %16, %5 : vector<16x128xf32>
    %18 = arith.addf %14, %17 : vector<16x128xf32>
    %c0_6 = arith.constant 0 : index
    %19 = memref.load %arg3[%c0_6] : memref<4xf32, #tpu.memory_space<smem>>
    %20 = vector.broadcast %19 : f32 to vector<16x128xf32>
    %21 = arith.addf %18, %20 : vector<16x128xf32>
    %cst_7 = arith.constant 0.000000e+00 : f32
    %22 = vector.broadcast %cst_7 : f32 to vector<16x128xf32>
    %23 = arith.maximumf %21, %22 : vector<16x128xf32>
    %24 = vector.extract_strided_slice %6 {offsets = [0, 0], sizes = [1, 128], strides = [1, 1]} : vector<4x128xf32> to vector<1x128xf32>
    %25 = vector.shape_cast %24 : vector<1x128xf32> to vector<128xf32>
    %26 = vector.shape_cast %25 : vector<128xf32> to vector<1x128xf32>
    %27 = vector.broadcast %26 : vector<1x128xf32> to vector<16x128xf32>
    %28 = arith.mulf %23, %27 : vector<16x128xf32>
    %29 = arith.addf %7, %28 : vector<16x128xf32>
    %c3 = arith.constant 3 : index
    %30 = memref.load %arg2[%c3] : memref<12xf32, #tpu.memory_space<smem>>
    %31 = vector.broadcast %30 : f32 to vector<16x128xf32>
    %32 = arith.mulf %31, %1 : vector<16x128xf32>
    %c4 = arith.constant 4 : index
    %33 = memref.load %arg2[%c4] : memref<12xf32, #tpu.memory_space<smem>>
    %34 = vector.broadcast %33 : f32 to vector<16x128xf32>
    %35 = arith.mulf %34, %3 : vector<16x128xf32>
    %36 = arith.addf %32, %35 : vector<16x128xf32>
    %c5 = arith.constant 5 : index
    %37 = memref.load %arg2[%c5] : memref<12xf32, #tpu.memory_space<smem>>
    %38 = vector.broadcast %37 : f32 to vector<16x128xf32>
    %39 = arith.mulf %38, %5 : vector<16x128xf32>
    %40 = arith.addf %36, %39 : vector<16x128xf32>
    %c1_8 = arith.constant 1 : index
    %41 = memref.load %arg3[%c1_8] : memref<4xf32, #tpu.memory_space<smem>>
    %42 = vector.broadcast %41 : f32 to vector<16x128xf32>
    %43 = arith.addf %40, %42 : vector<16x128xf32>
    %cst_9 = arith.constant 0.000000e+00 : f32
    %44 = vector.broadcast %cst_9 : f32 to vector<16x128xf32>
    %45 = arith.maximumf %43, %44 : vector<16x128xf32>
    %46 = vector.extract_strided_slice %6 {offsets = [1, 0], sizes = [1, 128], strides = [1, 1]} : vector<4x128xf32> to vector<1x128xf32>
    %47 = vector.shape_cast %46 : vector<1x128xf32> to vector<128xf32>
    %48 = vector.shape_cast %47 : vector<128xf32> to vector<1x128xf32>
    %49 = vector.broadcast %48 : vector<1x128xf32> to vector<16x128xf32>
    %50 = arith.mulf %45, %49 : vector<16x128xf32>
    %51 = arith.addf %29, %50 : vector<16x128xf32>
    %c6 = arith.constant 6 : index
    %52 = memref.load %arg2[%c6] : memref<12xf32, #tpu.memory_space<smem>>
    %53 = vector.broadcast %52 : f32 to vector<16x128xf32>
    %54 = arith.mulf %53, %1 : vector<16x128xf32>
    %c7 = arith.constant 7 : index
    %55 = memref.load %arg2[%c7] : memref<12xf32, #tpu.memory_space<smem>>
    %56 = vector.broadcast %55 : f32 to vector<16x128xf32>
    %57 = arith.mulf %56, %3 : vector<16x128xf32>
    %58 = arith.addf %54, %57 : vector<16x128xf32>
    %c8 = arith.constant 8 : index
    %59 = memref.load %arg2[%c8] : memref<12xf32, #tpu.memory_space<smem>>
    %60 = vector.broadcast %59 : f32 to vector<16x128xf32>
    %61 = arith.mulf %60, %5 : vector<16x128xf32>
    %62 = arith.addf %58, %61 : vector<16x128xf32>
    %c2_10 = arith.constant 2 : index
    %63 = memref.load %arg3[%c2_10] : memref<4xf32, #tpu.memory_space<smem>>
    %64 = vector.broadcast %63 : f32 to vector<16x128xf32>
    %65 = arith.addf %62, %64 : vector<16x128xf32>
    %cst_11 = arith.constant 0.000000e+00 : f32
    %66 = vector.broadcast %cst_11 : f32 to vector<16x128xf32>
    %67 = arith.maximumf %65, %66 : vector<16x128xf32>
    %68 = vector.extract_strided_slice %6 {offsets = [2, 0], sizes = [1, 128], strides = [1, 1]} : vector<4x128xf32> to vector<1x128xf32>
    %69 = vector.shape_cast %68 : vector<1x128xf32> to vector<128xf32>
    %70 = vector.shape_cast %69 : vector<128xf32> to vector<1x128xf32>
    %71 = vector.broadcast %70 : vector<1x128xf32> to vector<16x128xf32>
    %72 = arith.mulf %67, %71 : vector<16x128xf32>
    %73 = arith.addf %51, %72 : vector<16x128xf32>
    %c9 = arith.constant 9 : index
    %74 = memref.load %arg2[%c9] : memref<12xf32, #tpu.memory_space<smem>>
    %75 = vector.broadcast %74 : f32 to vector<16x128xf32>
    %76 = arith.mulf %75, %1 : vector<16x128xf32>
    %c10 = arith.constant 10 : index
    %77 = memref.load %arg2[%c10] : memref<12xf32, #tpu.memory_space<smem>>
    %78 = vector.broadcast %77 : f32 to vector<16x128xf32>
    %79 = arith.mulf %78, %3 : vector<16x128xf32>
    %80 = arith.addf %76, %79 : vector<16x128xf32>
    %c11 = arith.constant 11 : index
    %81 = memref.load %arg2[%c11] : memref<12xf32, #tpu.memory_space<smem>>
    %82 = vector.broadcast %81 : f32 to vector<16x128xf32>
    %83 = arith.mulf %82, %5 : vector<16x128xf32>
    %84 = arith.addf %80, %83 : vector<16x128xf32>
    %c3_12 = arith.constant 3 : index
    %85 = memref.load %arg3[%c3_12] : memref<4xf32, #tpu.memory_space<smem>>
    %86 = vector.broadcast %85 : f32 to vector<16x128xf32>
    %87 = arith.addf %84, %86 : vector<16x128xf32>
    %cst_13 = arith.constant 0.000000e+00 : f32
    %88 = vector.broadcast %cst_13 : f32 to vector<16x128xf32>
    %89 = arith.maximumf %87, %88 : vector<16x128xf32>
    %90 = vector.extract_strided_slice %6 {offsets = [3, 0], sizes = [1, 128], strides = [1, 1]} : vector<4x128xf32> to vector<1x128xf32>
    %91 = vector.shape_cast %90 : vector<1x128xf32> to vector<128xf32>
    %92 = vector.shape_cast %91 : vector<128xf32> to vector<1x128xf32>
    %93 = vector.broadcast %92 : vector<1x128xf32> to vector<16x128xf32>
    %94 = arith.mulf %89, %93 : vector<16x128xf32>
    %95 = arith.addf %73, %94 : vector<16x128xf32>
    %cst_14 = arith.constant dense<0.000000e+00> : vector<16xf32>
    %96 = vector.multi_reduction <add>, %95, %cst_14 [1] : vector<16x128xf32> to vector<16xf32>
    %97 = vector.shape_cast %96 : vector<16xf32> to vector<16x1xf32>
    %c0_15 = arith.constant 0 : index
    %98 = memref.load %arg4[%c0_15] : memref<1xf32, #tpu.memory_space<smem>>
    %99 = vector.broadcast %98 : f32 to vector<16x1xf32>
    %100 = arith.addf %97, %99 : vector<16x1xf32>
    %c0_16 = arith.constant 0 : index
    %c0_17 = arith.constant 0 : index
    %101 = vector.load %arg6[%c0_16, %c0_17] : memref<16x1xf32, #tpu.memory_space<vmem>>, vector<16x1xf32>
    tpu.vector_store %arg6[%c0_16, %c0_17], %100 {strides = array<i32>} : memref<16x1xf32, #tpu.memory_space<vmem>>, vector<16x1xf32>,
    return
  }
  func.func @transform_0(%arg0: i32) -> (i32, i32) {
    %c0_i32 = arith.constant 0 : i32
    %c0_i32_0 = arith.constant 0 : i32
    return %arg0, %c0_i32 : i32, i32
  }
  func.func @transform_1(%arg0: i32) -> i32 {
    %c0_i32 = arith.constant 0 : i32
    %c0_i32_0 = arith.constant 0 : i32
    return %c0_i32 : i32
  }
  func.func @transform_2(%arg0: i32) -> i32 {
    %c0_i32 = arith.constant 0 : i32
    %c0_i32_0 = arith.constant 0 : i32
    return %c0_i32 : i32
  }
  func.func @transform_3(%arg0: i32) -> i32 {
    %c0_i32 = arith.constant 0 : i32
    %c0_i32_0 = arith.constant 0 : i32
    return %c0_i32 : i32
  }
  func.func @transform_4(%arg0: i32) -> (i32, i32) {
    %c0_i32 = arith.constant 0 : i32
    %c0_i32_0 = arith.constant 0 : i32
    %c0_i32_1 = arith.constant 0 : i32
    return %c0_i32, %c0_i32_0 : i32, i32
  }
  func.func @transform_5(%arg0: i32) -> (i32, i32) {
    %c0_i32 = arith.constant 0 : i32
    %c0_i32_0 = arith.constant 0 : i32
    return %arg0, %c0_i32 : i32, i32
  }
}

</mosaic_0001>

<llo_original>
// kernel: tpu_custom_call.1
$region0: #{tpu_custom_call.1}
  #allocation0 [shape = 'u32[]', space=smem, size = 0x4, offset = 0x4, fixed_abs, tag = 'smem constant byte address 0x4 - core index']
  #allocation1 [shape = 'u32[72,128]{1,0:T(1,128)}', space=vmem, size = 0x9000, scoped, tag = 'internal scratch']
  #allocation2 [shape = 'f32[1]{0:T(128)S(6)}', space=smem, size = 0x200, scoped, tag = 'scoped memory for tpu_custom_call.1']
  %s0 = inlined_call_operand.hbm [shape: bf16[16,384], index: 0, kind: input, shape index: {}]
  %s1 = inlined_call_operand.hbm [shape: f32[12], index: 1, kind: input, shape index: {}]
  %s2 = inlined_call_operand.hbm [shape: f32[4], index: 2, kind: input, shape index: {}]
  %s3 = inlined_call_operand.<no memory space> [shape: f32[1], index: 3, kind: input, shape index: {}]
  %s4 = inlined_call_operand.vmem [shape: f32[4,128], index: 4, kind: input, shape index: {}]
  %s5 = inlined_call_operand.vmem [shape: f32[16,1], index: 5, kind: output, shape index: {}]
  %s6 = sld [smem:[#allocation0]]
  $region42: #{tpu_custom_call.1} parent=0
    _
  %s8 = ssub.s32 1, %s6
  %s9 = scalar_select 0, %s8, %s6
  %10 = sst [smem:[#allocation2]] %s3
  $region1: #{tpu_custom_call.1} parent=0
    #allocation3 [shape = 'u8[12288]{0}', space=vmem, size = 0x3000, scoped, tag = 'input window, operand 0, single buffered']
    #allocation4 [shape = 's32[1]{0}', space=sflag, size = 0x4, scoped, tag = 'scoped memory for tpu_custom_call.1']
    #allocation5 [shape = 's32[1]{0}', space=sflag, size = 0x4, scoped, tag = 'scoped memory for tpu_custom_call.1']
    #allocation6 [shape = 'u8[512]{0}', space=smem, size = 0x200, scoped, tag = 'input window, operand 1, single buffered']
    #allocation7 [shape = 'u8[512]{0}', space=smem, size = 0x200, scoped, tag = 'input window, operand 2, single buffered']
    #allocation8 [shape = 's32[1]{0}', space=sflag, size = 0x4, scoped, tag = 'scoped memory for tpu_custom_call.1']
    %11 = vsyncpa [#allocation4], 0
    %12 = vsyncpa [#allocation5], 0
    %13 = vsyncpa [#allocation8], 0
    // Predicated region
    $region2: #{tpu_custom_call.1} parent=1 // pred_check
      _
    $region3: #{tpu_custom_call.1} parent=1 // pred_check_branch
      %15 = sbr.rel (0) target = $region5
    $region4: #{tpu_custom_call.1} parent=1 // pred_region
      %17 = vsyncadd [#allocation4], 0
      %s18 = sshll.u32 %s0, 4
      %s19 = int_to_ptr.hbm [resolvable:$true] %s18
      %s20 = sshll.u32 [#allocation3], 4
      %s21 = int_to_ptr.vmem [resolvable:$true] %s20
      %26 = dma.hbm_to_vmem [thread:$0]  %s19, 384, %s21, [#allocation4], 192, 192, 12
    $region5: #{tpu_custom_call.1} parent=1 // pred_fallthru
      _
    // Predicated region
    $region6: #{tpu_custom_call.1} parent=1 // pred_check
      _
    $region7: #{tpu_custom_call.1} parent=1 // pred_check_branch
      %28 = sbr.rel (0) target = $region9
    $region8: #{tpu_custom_call.1} parent=1 // pred_region
      %30 = vsyncadd [#allocation5], 0
      %s32 = sshll.u32 %s1, 4
      %s33 = int_to_ptr.hbm [resolvable:$true] %s32
      %35 = dma.hbm_to_smem %s33, 16, [#allocation6], [#allocation5]
    $region9: #{tpu_custom_call.1} parent=1 // pred_fallthru
      _
    // Predicated region
    $region10: #{tpu_custom_call.1} parent=1 // pred_check
      _
    $region11: #{tpu_custom_call.1} parent=1 // pred_check_branch
      %37 = sbr.rel (0) target = $region13
    $region12: #{tpu_custom_call.1} parent=1 // pred_region
      %39 = vsyncadd [#allocation8], 0
      %s41 = sshll.u32 %s2, 4
      %s42 = int_to_ptr.hbm [resolvable:$true] %s41
      %44 = dma.hbm_to_smem %s42, 16, [#allocation7], [#allocation8]
    $region13: #{tpu_custom_call.1} parent=1 // pred_fallthru
      _
    // Predicated region
    $region14: #{tpu_custom_call.1} parent=1 // pred_check
      _
    $region15: #{tpu_custom_call.1} parent=1 // pred_check_branch
      %46 = sbr.rel (0) target = $region17
    $region16: #{tpu_custom_call.1} parent=1 // pred_region
      _
    $region17: #{tpu_custom_call.1} parent=1 // pred_fallthru
      _
    // Predicated region
    $region18: #{tpu_custom_call.1} parent=1 // pred_check
      _
    $region19: #{tpu_custom_call.1} parent=1 // pred_check_branch
      %48 = sbr.rel (0) target = $region21
    $region20: #{tpu_custom_call.1} parent=1 // pred_region
      _
    $region21: #{tpu_custom_call.1} parent=1 // pred_fallthru
      _
    // Predicated region
    $region22: #{tpu_custom_call.1} parent=1 // pred_check
      _
    $region23: #{tpu_custom_call.1} parent=1 // pred_check_branch
      %50 = sbr.rel (0) target = $region25
    $region24: #{tpu_custom_call.1} parent=1 // pred_region
      %52 = dma.done [#allocation4], 384
    $region25: #{tpu_custom_call.1} parent=1 // pred_fallthru
      _
    // Predicated region
    $region26: #{tpu_custom_call.1} parent=1 // pred_check
      _
    $region27: #{tpu_custom_call.1} parent=1 // pred_check_branch
      %54 = sbr.rel (0) target = $region29
    $region28: #{tpu_custom_call.1} parent=1 // pred_region
      %56 = dma.done [#allocation5], 16
    $region29: #{tpu_custom_call.1} parent=1 // pred_fallthru
      _
    // Predicated region
    $region30: #{tpu_custom_call.1} parent=1 // pred_check
      _
    $region31: #{tpu_custom_call.1} parent=1 // pred_check_branch
      %58 = sbr.rel (0) target = $region33
    $region32: #{tpu_custom_call.1} parent=1 // pred_region
      %60 = dma.done [#allocation8], 16
    $region33: #{tpu_custom_call.1} parent=1 // pred_fallthru
      _
    %61 = sfence
    %v62 = vld [vmem:[#allocation3] sm:$0xf]
    %v63 = vld [vmem:[#allocation3 + $0xc] sm:$0xf]
    %v64 = vunpack.c.l.bf16 %v62
    %v65 = vunpack.c.l.bf16 %v63
    %v66 = vld [vmem:[#allocation3 + $0x4] sm:$0xf]
    %v67 = vld [vmem:[#allocation3 + $0x10] sm:$0xf]
    %v68 = vunpack.c.l.bf16 %v66
    %v69 = vunpack.c.l.bf16 %v67
    %v70 = vld [vmem:[#allocation3 + $0x8] sm:$0xf]
    %v71 = vld [vmem:[#allocation3 + $0x14] sm:$0xf]
    %v72 = vunpack.c.l.bf16 %v70
    %v73 = vunpack.c.l.bf16 %v71
    %v74 = vld [vmem:[%s4] sm:$0xf]
    %s75 = sld [smem:[#allocation6]]
    %v76 = vstv %s75
    %v77 = vmul.f32 %v76, %v64
    %v78 = vmul.f32 %v76, %v65
    %s79 = sld [smem:[#allocation6 + $0x1]]
    %v80 = vstv %s79
    %v81 = vmul.f32 %v80, %v68
    %v82 = vmul.f32 %v80, %v69
    %v83 = vadd.f32 %v77, %v81
    %v84 = vadd.f32 %v78, %v82
    %s85 = sld [smem:[#allocation6 + $0x2]]
    %v86 = vstv %s85
    %v87 = vmul.f32 %v86, %v72
    %v88 = vmul.f32 %v86, %v73
    %v89 = vadd.f32 %v83, %v87
    %v90 = vadd.f32 %v84, %v88
    %s91 = sld [smem:[#allocation7]]
    %v92 = vstv %s91
    %v93 = vadd.f32 %v89, %v92
    %v94 = vadd.f32 %v90, %v92
    %v95 = vmax.f32 %v93, 0.0
    %v96 = vmax.f32 %v94, 0.0
    %v97 = vperm.slane %v74, 0
    %v98 = vmul.f32 %v95, %v97
    %v99 = vmul.f32 %v96, %v97
    %v100 = vadd.f32 %v98, 0.0
    %v101 = vadd.f32 %v99, 0.0
    %s102 = sld [smem:[#allocation6 + $0x3]]
    %v103 = vstv %s102
    %v104 = vmul.f32 %v103, %v64
    %v105 = vmul.f32 %v103, %v65
    %s106 = sld [smem:[#allocation6 + $0x4]]
    %v107 = vstv %s106
    %v108 = vmul.f32 %v107, %v68
    %v109 = vmul.f32 %v107, %v69
    %v110 = vadd.f32 %v104, %v108
    %v111 = vadd.f32 %v105, %v109
    %s112 = sld [smem:[#allocation6 + $0x5]]
    %v113 = vstv %s112
    %v114 = vmul.f32 %v113, %v72
    %v115 = vmul.f32 %v113, %v73
    %v116 = vadd.f32 %v110, %v114
    %v117 = vadd.f32 %v111, %v115
    %s118 = sld [smem:[#allocation7 + $0x1]]
    %v119 = vstv %s118
    %v120 = vadd.f32 %v116, %v119
    %v121 = vadd.f32 %v117, %v119
    %v122 = vmax.f32 %v120, 0.0
    %v123 = vmax.f32 %v121, 0.0
    %v124 = vperm.slane %v74, 1
    %v125 = vmul.f32 %v122, %v124
    %v126 = vmul.f32 %v123, %v124
    %v127 = vadd.f32 %v100, %v125
    %v128 = vadd.f32 %v101, %v126
    %s129 = sld [smem:[#allocation6 + $0x6]]
    %v130 = vstv %s129
    %v131 = vmul.f32 %v130, %v64
    %v132 = vmul.f32 %v130, %v65
    %s133 = sld [smem:[#allocation6 + $0x7]]
    %v134 = vstv %s133
    %v135 = vmul.f32 %v134, %v68
    %v136 = vmul.f32 %v134, %v69
    %v137 = vadd.f32 %v131, %v135
    %v138 = vadd.f32 %v132, %v136
    %s139 = sld [smem:[#allocation6 + $0x8]]
    %v140 = vstv %s139
    %v141 = vmul.f32 %v140, %v72
    %v142 = vmul.f32 %v140, %v73
    %v143 = vadd.f32 %v137, %v141
    %v144 = vadd.f32 %v138, %v142
    %s145 = sld [smem:[#allocation7 + $0x2]]
    %v146 = vstv %s145
    %v147 = vadd.f32 %v143, %v146
    %v148 = vadd.f32 %v144, %v146
    %v149 = vmax.f32 %v147, 0.0
    %v150 = vmax.f32 %v148, 0.0
    %v151 = vperm.slane %v74, 2
    %v152 = vmul.f32 %v149, %v151
    %v153 = vmul.f32 %v150, %v151
    %v154 = vadd.f32 %v127, %v152
    %v155 = vadd.f32 %v128, %v153
    %s156 = sld [smem:[#allocation6 + $0x9]]
    %v157 = vstv %s156
    %v158 = vmul.f32 %v157, %v64
    %v159 = vmul.f32 %v157, %v65
    %s160 = sld [smem:[#allocation6 + $0xa]]
    %v161 = vstv %s160
    %v162 = vmul.f32 %v161, %v68
    %v163 = vmul.f32 %v161, %v69
    %v164 = vadd.f32 %v158, %v162
    %v165 = vadd.f32 %v159, %v163
    %s166 = sld [smem:[#allocation6 + $0xb]]
    %v167 = vstv %s166
    %v168 = vmul.f32 %v167, %v72
    %v169 = vmul.f32 %v167, %v73
    %v170 = vadd.f32 %v164, %v168
    %v171 = vadd.f32 %v165, %v169
    %s172 = sld [smem:[#allocation7 + $0x3]]
    %v173 = vstv %s172
    %v174 = vadd.f32 %v170, %v173
    %v175 = vadd.f32 %v171, %v173
    %v176 = vmax.f32 %v174, 0.0
    %v177 = vmax.f32 %v175, 0.0
    %v178 = vperm.slane %v74, 3
    %v179 = vmul.f32 %v176, %v178
    %v180 = vmul.f32 %v177, %v178
    %v181 = vadd.f32 %v154, %v179
    %v182 = vadd.f32 %v155, %v180
    %183 = vadd.xlane.f32.xlu0 %v181
    %v184 = vpop.xlane.xlu0 %183
    %185 = vadd.xlane.f32.xlu0 %v182
    %v186 = vpop.xlane.xlu0 %185
    %s187 = sld [smem:[#allocation2]]
    %v188 = vstv %s187
    %v189 = vadd.f32 %v184, %v188
    %v190 = vadd.f32 %v186, %v188
    %vm191 = vcmask 7168
    %192 = vst.msk [vmem:[%s5] sm:$0xff] %vm191, %v189
    %193 = vst.msk [vmem:[%s5 + $0x8] sm:$0xff] %vm191, %v190
    // Predicated region
    $region34: #{tpu_custom_call.1} parent=1 // pred_check
      _
    $region35: #{tpu_custom_call.1} parent=1 // pred_check_branch
      %195 = sbr.rel (0) target = $region37
    $region36: #{tpu_custom_call.1} parent=1 // pred_region
      _
    $region37: #{tpu_custom_call.1} parent=1 // pred_fallthru
      _
    // Predicated region
    $region38: #{tpu_custom_call.1} parent=1 // pred_check
      _
    $region39: #{tpu_custom_call.1} parent=1 // pred_check_branch
      %197 = sbr.rel (0) target = $region41
    $region40: #{tpu_custom_call.1} parent=1 // pred_region
      _
    $region41: #{tpu_custom_call.1} parent=1 // pred_fallthru
      _
    %198 = vsyncpa [#allocation4], 1
    %199 = vsyncpa [#allocation5], 1
    %200 = vsyncpa [#allocation8], 1

</llo_original>
